<compile_context>
chip_gen: v7x
topology: tpu7x:2x2x1
jax: 0.10.0
libtpu: 0.0.40
codegen_flags: <defaults>
</compile_context>

<pallas_src>
import functools

import jax
import jax.numpy as jnp
from jax.experimental import pallas as pl
from jax.experimental.pallas import tpu as pltpu


def _encoder_kernel(p_ref, w_ref, gamma_ref, beta_ref, o_ref, *, eps, inv_count, pad_cols):
    # p_ref     : (N, K, Mp)     im2col patches; K = Cin*KH*KW, Mp = pad128(Ho*Wo) on lanes
    # w_ref     : (Cout, K)      conv weight flattened from OIHW (k-order = (cin, kh, kw))
    # gamma_ref : (Cout, 1)      BN weight
    # beta_ref  : (Cout, 1)      BN bias
    # o_ref     : (N, Cout, Mp)  normalized + ReLU'd output (lane-dense, unmasked stores)
    n_batch = p_ref.shape[0]
    cout, k = w_ref.shape

    # One batched MXU contraction over K (weight broadcast across the batch axis).
    w_b = jnp.broadcast_to(w_ref[...][None], (n_batch, cout, k))
    acc = jnp.einsum("nok,nkm->nom", w_b, p_ref[...],
                     preferred_element_type=jnp.float32)          # (N, Cout, Mp)

    # Training-mode BatchNorm2d stats over (N, Ho*Wo), centered two-pass form.
    s1 = jnp.sum(jnp.sum(acc, axis=2, keepdims=True), axis=0, keepdims=True)   # (1, Cout, 1)
    mean = s1 * inv_count            # pad columns are exactly 0 -> mean is exact
    d = acc - mean
    ssq = jnp.sum(jnp.sum(d * d, axis=2, keepdims=True), axis=0, keepdims=True)
    if pad_cols:
        # Each all-zero pad column contributed exactly (0 - mean)^2 = mean^2; remove it.
        ssq = ssq - pad_cols * (mean * mean)
    var = ssq * inv_count            # biased variance over the N*Ho*Wo real elements

    # Fused per-channel scale/shift + ReLU: one FMA pass over acc.
    scale = gamma_ref[...][None] * jax.lax.rsqrt(var + eps)        # (1, Cout, 1)
    shift = beta_ref[...][None] - mean * scale                     # (1, Cout, 1)
    o_ref[...] = jnp.maximum(acc * scale + shift, 0.0).astype(o_ref.dtype)


def spec_extraction_encoder_forward(x_nchw, weight_oihw, bias, gamma, beta,
                                    *, k=3, s=1, p=0, eps=1e-5):
    """Pallas implementation of spec_extraction_encoder.forward (fresh module => training BN).

    x_nchw      : (N, Cin, H, W)     PyTorch NCHW input
    weight_oihw : (Cout, Cin, k, 3)  nn.Conv2d weight layout
    bias        : (Cout,)            unused: a per-channel constant cancels exactly under
                                     training-mode BatchNorm mean subtraction
    gamma, beta : (Cout,)            BatchNorm2d affine params
    returns     : (N, Cout, Ho, Wo)  NCHW
    """
    del bias  # exact cancellation under training-mode BN; see module-level comment.

    N, Cin, H, W = x_nchw.shape
    Cout = weight_oihw.shape[0]
    KH, KW = k, 3
    pad_h, pad_w = p, 1
    stride_h = s

    Ho = (H + 2 * pad_h - KH) // stride_h + 1
    Wo = (W + 2 * pad_w - KW) + 1        # stride_w = 1
    M = Ho * Wo                          # per-batch pixel count (lane axis)
    Mp = ((M + 127) // 128) * 128        # lane-dense: pad to a multiple of 128
    K = Cin * KH * KW

    # im2col built directly in (N, K, Ho*Wo) layout: pad NCHW, stack the 9 taps next to Cin,
    # reshape (contiguous axes only -> no relayout passes).
    xp = jnp.pad(x_nchw, ((0, 0), (0, 0), (pad_h, pad_h), (pad_w, pad_w)))
    cols = []
    for kh in range(KH):
        for kw in range(KW):
            cols.append(xp[:, :, kh:kh + (Ho - 1) * stride_h + 1:stride_h, kw:kw + Wo])
    patches = jnp.stack(cols, axis=2).reshape(N, K, M)           # k-order = (cin, kh, kw)
    if Mp != M:
        patches = jnp.pad(patches, ((0, 0), (0, 0), (0, Mp - M)))

    # (Cout, Cin, KH, KW) flattens straight to (Cout, K) with the same (cin, kh, kw) k-order.
    w_flat = weight_oihw.reshape(Cout, K).astype(jnp.float32)

    kernel = functools.partial(
        _encoder_kernel,
        eps=eps,
        inv_count=1.0 / float(N * M),
        pad_cols=float(N * (Mp - M)),
    )

    cost = pl.CostEstimate(
        flops=2 * N * Cout * K * Mp,
        transcendentals=Cout,
        bytes_accessed=4 * (N * K * Mp + Cout * K + 2 * Cout + N * Cout * Mp),
    )

    out_pad = pl.pallas_call(
        kernel,
        out_shape=jax.ShapeDtypeStruct((N, Cout, Mp), x_nchw.dtype),
        in_specs=[
            pl.BlockSpec(memory_space=pltpu.VMEM),   # patches (N, K, Mp)
            pl.BlockSpec(memory_space=pltpu.VMEM),   # weight  (Cout, K)
            pl.BlockSpec(memory_space=pltpu.VMEM),   # gamma   (Cout, 1)
            pl.BlockSpec(memory_space=pltpu.VMEM),   # beta    (Cout, 1)
        ],
        out_specs=pl.BlockSpec(memory_space=pltpu.VMEM),
        cost_estimate=cost,
    )(
        patches.astype(jnp.float32),
        w_flat,
        gamma.reshape(Cout, 1).astype(jnp.float32),
        beta.reshape(Cout, 1).astype(jnp.float32),
    )

    # Drop padded lane columns; reshape straight to NCHW (no transpose).
    return out_pad[:, :, :M].reshape(N, Cout, Ho, Wo)


def _reference_forward(x_nchw, weight_oihw, bias, gamma, beta, *, k=3, s=1, p=0, eps=1e-5):
    """Pure-JAX reference (mirrors PyTorch training-mode forward, incl. conv bias)."""
    conv = jax.lax.conv_general_dilated(
        x_nchw.astype(jnp.float32),
        weight_oihw.astype(jnp.float32),
        window_strides=(s, 1),
        padding=((p, p), (1, 1)),
        dimension_numbers=("NCHW", "OIHW", "NCHW"),
    ) + bias[None, :, None, None]
    mean = jnp.mean(conv, axis=(0, 2, 3), keepdims=True)
    var = jnp.mean((conv - mean) ** 2, axis=(0, 2, 3), keepdims=True)
    y = (conv - mean) / jnp.sqrt(var + eps)
    y = y * gamma[None, :, None, None] + beta[None, :, None, None]
    return jnp.maximum(y, 0.0)


if __name__ == "__main__":
    # Small shapes consistent with the module: N=2, Cin=4, Cout=8, H=W=16, k=3, s=1, p=0.
    N, Cin, Cout, H, W = 2, 4, 8, 16, 16
    k, s, p = 3, 1, 0

    key = jax.random.PRNGKey(0)
    kx, kw, kb = jax.random.split(key, 3)

    x = jax.random.normal(kx, (N, Cin, H, W), dtype=jnp.float32)

    # Deterministic parameter init (Conv2d weight (Cout, Cin, k, 3), bias (Cout,));
    # BatchNorm2d default init: gamma=1, beta=0, eps=1e-5.
    fan_in = Cin * k * 3
    bound = 1.0 / (fan_in ** 0.5)
    weight = jax.random.uniform(kw, (Cout, Cin, k, 3), jnp.float32, -bound, bound)
    bias = jax.random.uniform(kb, (Cout,), jnp.float32, -bound, bound)
    gamma = jnp.ones((Cout,), jnp.float32)
    beta = jnp.zeros((Cout,), jnp.float32)

    out = spec_extraction_encoder_forward(x, weight, bias, gamma, beta, k=k, s=s, p=p)
    out = jax.block_until_ready(out)

    ref = _reference_forward(x, weight, bias, gamma, beta, k=k, s=s, p=p)
    Ho = (H + 2 * p - k) // s + 1
    assert out.shape == (N, Cout, Ho, W), out.shape
    assert jnp.allclose(out, ref, atol=1e-4, rtol=1e-4), float(jnp.max(jnp.abs(out - ref)))

    # TODO(synk): BatchNorm2d running_mean/running_var side-effect updates are not produced
    # (only the forward output, matching the module's forward return value).
    print("KERNEL_OK")
</pallas_src>

<mosaic_0001>
module attributes {stable_mosaic.version = 11 : i64} {
  func.func @_encoder_kernel(%arg0: memref<2x36x256xf32, #tpu.memory_space<vmem>>, %arg1: memref<8x36xf32, #tpu.memory_space<vmem>>, %arg2: memref<8x1xf32, #tpu.memory_space<vmem>>, %arg3: memref<8x1xf32, #tpu.memory_space<vmem>>, %arg4: memref<2x8x256xf32, #tpu.memory_space<vmem>>) attributes {dimension_semantics = [], scalar_prefetch = 0 : i64, scratch_operands = 0 : i64, tpu.core_type = #tpu.core_type<tc>} {
    %c0 = arith.constant 0 : index
    %c0_0 = arith.constant 0 : index
    %0 = vector.load %arg1[%c0, %c0_0] : memref<8x36xf32, #tpu.memory_space<vmem>>, vector<8x36xf32>
    %1 = vector.shape_cast %0 : vector<8x36xf32> to vector<1x8x36xf32>
    %2 = vector.shape_cast %1 : vector<1x8x36xf32> to vector<1x8x36xf32>
    %3 = vector.broadcast %2 : vector<1x8x36xf32> to vector<2x8x36xf32>
    %c0_1 = arith.constant 0 : index
    %c0_2 = arith.constant 0 : index
    %c0_3 = arith.constant 0 : index
    %4 = vector.load %arg0[%c0_1, %c0_2, %c0_3] : memref<2x36x256xf32, #tpu.memory_space<vmem>>, vector<2x36x256xf32>
    "tpu.trace_start"() <{level = 10 : i32, message = "nok,nkm->nom"}> : () -> ()
    %cst = arith.constant dense<0.000000e+00> : vector<2x8x256xf32>
    %5 = tpu.matmul %3, %4, %cst {dimension_numbers = #tpu.dot_dimension_numbers<[2], [1], [1], [2], [0, 0, 0, 1, 1, 2], [0], [0]>} : vector<2x8x36xf32>, vector<2x36x256xf32>, vector<2x8x256xf32> -> vector<2x8x256xf32>
    "tpu.trace_stop"() : () -> ()
    %cst_4 = arith.constant dense<0.000000e+00> : vector<2x8xf32>
    %6 = vector.multi_reduction <add>, %5, %cst_4 [2] : vector<2x8x256xf32> to vector<2x8xf32>
    %7 = vector.shape_cast %6 : vector<2x8xf32> to vector<2x8x1xf32>
    %cst_5 = arith.constant dense<0.000000e+00> : vector<8x1xf32>
    %8 = vector.multi_reduction <add>, %7, %cst_5 [0] : vector<2x8x1xf32> to vector<8x1xf32>
    %9 = vector.shape_cast %8 : vector<8x1xf32> to vector<1x8x1xf32>
    %cst_6 = arith.constant 0.00223214296 : f32
    %10 = vector.broadcast %cst_6 : f32 to vector<1x8x1xf32>
    %11 = arith.mulf %9, %10 : vector<1x8x1xf32>
    %12 = vector.broadcast %11 : vector<1x8x1xf32> to vector<2x8x256xf32>
    %13 = arith.subf %5, %12 : vector<2x8x256xf32>
    %14 = arith.mulf %13, %13 : vector<2x8x256xf32>
    %cst_7 = arith.constant dense<0.000000e+00> : vector<2x8xf32>
    %15 = vector.multi_reduction <add>, %14, %cst_7 [2] : vector<2x8x256xf32> to vector<2x8xf32>
    %16 = vector.shape_cast %15 : vector<2x8xf32> to vector<2x8x1xf32>
    %cst_8 = arith.constant dense<0.000000e+00> : vector<8x1xf32>
    %17 = vector.multi_reduction <add>, %16, %cst_8 [0] : vector<2x8x1xf32> to vector<8x1xf32>
    %18 = vector.shape_cast %17 : vector<8x1xf32> to vector<1x8x1xf32>
    %19 = arith.mulf %11, %11 : vector<1x8x1xf32>
    %cst_9 = arith.constant 6.400000e+01 : f32
    %20 = vector.broadcast %cst_9 : f32 to vector<1x8x1xf32>
    %21 = arith.mulf %20, %19 : vector<1x8x1xf32>
    %22 = arith.subf %18, %21 : vector<1x8x1xf32>
    %cst_10 = arith.constant 0.00223214296 : f32
    %23 = vector.broadcast %cst_10 : f32 to vector<1x8x1xf32>
    %24 = arith.mulf %22, %23 : vector<1x8x1xf32>
    %c0_11 = arith.constant 0 : index
    %c0_12 = arith.constant 0 : index
    %25 = vector.load %arg2[%c0_11, %c0_12] : memref<8x1xf32, #tpu.memory_space<vmem>>, vector<8x1xf32>
    %26 = vector.shape_cast %25 : vector<8x1xf32> to vector<1x8x1xf32>
    %cst_13 = arith.constant 9.99999974E-6 : f32
    %27 = vector.broadcast %cst_13 : f32 to vector<1x8x1xf32>
    %28 = arith.addf %24, %27 : vector<1x8x1xf32>
    %29 = math.rsqrt %28 : vector<1x8x1xf32>
    %30 = arith.mulf %26, %29 : vector<1x8x1xf32>
    %c0_14 = arith.constant 0 : index
    %c0_15 = arith.constant 0 : index
    %31 = vector.load %arg3[%c0_14, %c0_15] : memref<8x1xf32, #tpu.memory_space<vmem>>, vector<8x1xf32>
    %32 = vector.shape_cast %31 : vector<8x1xf32> to vector<1x8x1xf32>
    %33 = arith.mulf %11, %30 : vector<1x8x1xf32>
    %34 = arith.subf %32, %33 : vector<1x8x1xf32>
    %35 = vector.broadcast %30 : vector<1x8x1xf32> to vector<2x8x256xf32>
    %36 = arith.mulf %5, %35 : vector<2x8x256xf32>
    %37 = vector.broadcast %34 : vector<1x8x1xf32> to vector<2x8x256xf32>
    %38 = arith.addf %36, %37 : vector<2x8x256xf32>
    %cst_16 = arith.constant 0.000000e+00 : f32
    %39 = vector.broadcast %cst_16 : f32 to vector<2x8x256xf32>
    %40 = arith.maximumf %38, %39 : vector<2x8x256xf32>
    %c0_17 = arith.constant 0 : index
    %c0_18 = arith.constant 0 : index
    %c0_19 = arith.constant 0 : index
    %41 = vector.load %arg4[%c0_17, %c0_18, %c0_19] : memref<2x8x256xf32, #tpu.memory_space<vmem>>, vector<2x8x256xf32>
    tpu.vector_store %arg4[%c0_17, %c0_18, %c0_19], %40 {strides = array<i32>} : memref<2x8x256xf32, #tpu.memory_space<vmem>>, vector<2x8x256xf32>,
    return
  }
}

</mosaic_0001>

<llo_original>
// kernel: tpu_custom_call.1
$region0: #{tpu_custom_call.1}
  #allocation0 [shape = 'u32[]', space=smem, size = 0x4, offset = 0x4, fixed_abs, tag = 'smem constant byte address 0x4 - core index']
  #allocation1 [shape = 'u32[144,128]{1,0:T(1,128)}', space=vmem, size = 0x12000, scoped, tag = 'internal scratch']
  %s0 = inlined_call_operand.vmem [shape: f32[2,36,256], index: 0, kind: input, shape index: {}]
  %s1 = inlined_call_operand.vmem [shape: f32[8,36], index: 1, kind: input, shape index: {}]
  %s2 = inlined_call_operand.vmem [shape: f32[8,1], index: 2, kind: input, shape index: {}]
  %s3 = inlined_call_operand.vmem [shape: f32[8,1], index: 3, kind: input, shape index: {}]
  %s4 = inlined_call_operand.hbm [shape: f32[2,8,256], index: 4, kind: output, shape index: {}]
  %s5 = sld [smem:[#allocation0]]
  $region26: #{tpu_custom_call.1} parent=0
    _
  %s7 = ssub.s32 1, %s5
  %s8 = scalar_select 0, %s7, %s5
  $region1: #{tpu_custom_call.1} parent=0
    #allocation2 [shape = 'u8[16384]{0}', space=vmem, size = 0x4000, scoped, tag = 'output window, operand 0, single buffered']
    #allocation3 [shape = 's32[1]{0}', space=sflag, size = 0x4, scoped, tag = 'scoped memory for tpu_custom_call.1']
    %9 = vsyncpa [#allocation3], 0
    // Predicated region
    $region2: #{tpu_custom_call.1} parent=1 // pred_check
      _
    $region3: #{tpu_custom_call.1} parent=1 // pred_check_branch
      %11 = sbr.rel (0) target = $region5
    $region4: #{tpu_custom_call.1} parent=1 // pred_region
      _
    $region5: #{tpu_custom_call.1} parent=1 // pred_fallthru
      _
    // Predicated region
    $region6: #{tpu_custom_call.1} parent=1 // pred_check
      _
    $region7: #{tpu_custom_call.1} parent=1 // pred_check_branch
      %13 = sbr.rel (0) target = $region9
    $region8: #{tpu_custom_call.1} parent=1 // pred_region
      _
    $region9: #{tpu_custom_call.1} parent=1 // pred_fallthru
      _
    // Predicated region
    $region10: #{tpu_custom_call.1} parent=1 // pred_check
      _
    $region11: #{tpu_custom_call.1} parent=1 // pred_check_branch
      %15 = sbr.rel (0) target = $region13
    $region12: #{tpu_custom_call.1} parent=1 // pred_region
      _
    $region13: #{tpu_custom_call.1} parent=1 // pred_fallthru
      _
    // Predicated region
    $region14: #{tpu_custom_call.1} parent=1 // pred_check
      _
    $region15: #{tpu_custom_call.1} parent=1 // pred_check_branch
      %17 = sbr.rel (0) target = $region17
    $region16: #{tpu_custom_call.1} parent=1 // pred_region
      _
    $region17: #{tpu_custom_call.1} parent=1 // pred_fallthru
      _
    %v18 = vld [vmem:[%s1] sm:$0xff]
    %v19 = vld [vmem:[%s0] sm:$0xff]
    %v20 = vld [vmem:[%s0 + $0x8] sm:$0xff]
    %v21 = vld [vmem:[%s0 + $0x10] sm:$0xff]
    %v22 = vld [vmem:[%s0 + $0x18] sm:$0xff]
    %v23 = vld [vmem:[%s0 + $0x20] sm:$0xff]
    %v24 = vld [vmem:[%s0 + $0x28] sm:$0xff]
    %v25 = vld [vmem:[%s0 + $0x30] sm:$0xff]
    %v26 = vld [vmem:[%s0 + $0x38] sm:$0xff]
    %v27 = vld [vmem:[%s0 + $0x40] sm:$0xf]
    %v28 = vld [vmem:[%s0 + $0x48] sm:$0xf]
    %v29 = vld [vmem:[%s0 + $0x50] sm:$0xff]
    %v30 = vld [vmem:[%s0 + $0x58] sm:$0xff]
    %v31 = vld [vmem:[%s0 + $0x60] sm:$0xff]
    %v32 = vld [vmem:[%s0 + $0x68] sm:$0xff]
    %v33 = vld [vmem:[%s0 + $0x70] sm:$0xff]
    %v34 = vld [vmem:[%s0 + $0x78] sm:$0xff]
    %v35 = vld [vmem:[%s0 + $0x80] sm:$0xff]
    %v36 = vld [vmem:[%s0 + $0x88] sm:$0xff]
    %v37 = vld [vmem:[%s0 + $0x90] sm:$0xf]
    %v38 = vld [vmem:[%s0 + $0x98] sm:$0xf]
    %vm39 = vcmask 293888
    %v41 = vsel %vm39, %v18, 0
    %vm43 = vcmask 1043456
    %v45 = vsel %vm43, %v27, 0
    %v48 = vsel %vm43, %v28, 0
    %50 = vmatprep.subr.mxu0 %v20
    %51 = vmatpush1.msra.mxu0 %v19
    %52 = vmatprep.subr.mxu0 %v22
    %53 = vmatpush1.msra.mxu0 %v21
    %54 = vmatprep.subr.mxu0 %v24
    %55 = vmatpush1.msra.mxu0 %v23
    %56 = vmatprep.subr.mxu0 %v26
    %57 = vmatpush1.msra.mxu0 %v25
    %58 = vmatprep.subr.mxu0 %v48
    %59 = vmatpush1.msra.mxu0 %v45
    %60 = vmatprep.subr.mxu0 0.0
    %61 = vmatpush1.msra.mxu0 0.0
    %62 = vmatprep.subr.mxu0 0.0
    %63 = vmatpush1.msra.mxu0 0.0
    %64 = vmatprep.subr.mxu0 0.0
    %65 = vmatpush1.msra.mxu0 0.0
    %66 = vmatprep.subr.mxu0 0.0
    %67 = vmatpush1.msra.mxu0 0.0
    %68 = vmatprep.subr.mxu0 0.0
    %69 = vmatpush1.msra.mxu0 0.0
    %70 = vmatprep.subr.mxu0 0.0
    %71 = vmatpush1.msra.mxu0 0.0
    %72 = vmatprep.subr.mxu0 0.0
    %73 = vmatpush1.msra.mxu0 0.0
    %74 = vmatprep.subr.mxu0 0.0
    %75 = vmatpush1.msra.mxu0 0.0
    %76 = vmatprep.subr.mxu0 0.0
    %77 = vmatpush1.msra.mxu0 0.0
    %78 = vmatprep.subr.mxu0 0.0
    %79 = vmatpush1.msra.mxu0 0.0
    %80 = vmatprep.subr.mxu0 0.0
    %81 = vmatpush1.msra.mxu0 0.0
    %82 = vmatprep.subr.mxu0 0.0
    %83 = vmatpush1.msra.mxu0 0.0
    %84 = vmatprep.subr.mxu0 0.0
    %85 = vmatpush1.msra.mxu0 0.0
    %86 = vmatprep.subr.mxu0 0.0
    %87 = vmatpush1.msra.mxu0 0.0
    %88 = vmatprep.subr.mxu0 0.0
    %89 = vmatpush1.msra.mxu0 0.0
    %90 = vmatprep.subr.mxu0 0.0
    %91 = vmatpush1.msra.mxu0 0.0
    %92 = vmatprep.subr.mxu0 0.0
    %93 = vmatpush1.msra.mxu0 0.0
    %94 = vmatprep.subr.mxu0 0.0
    %95 = vmatpush1.msra.mxu0 0.0
    %96 = vmatprep.subr.mxu0 0.0
    %97 = vmatpush1.msra.mxu0 0.0
    %98 = vmatprep.subr.mxu0 0.0
    %99 = vmatpush1.msra.mxu0 0.0
    %100 = vmatprep.subr.mxu0 0.0
    %101 = vmatpush1.msra.mxu0 0.0
    %102 = vmatprep.subr.mxu0 0.0
    %103 = vmatpush1.msra.mxu0 0.0
    %104 = vmatprep.subr.mxu0 0.0
    %105 = vmatpush1.msra.mxu0 0.0
    %106 = vmatprep.subr.mxu0 0.0
    %107 = vmatpush1.msra.mxu0 0.0
    %108 = vmatprep.subr.mxu0 0.0
    %109 = vmatpush1.msra.mxu0 0.0
    %110 = vmatprep.subr.mxu0 0.0
    %111 = vmatpush1.msra.mxu0 0.0
    %112 = vmatprep.subr.mxu0 0.0
    %113 = vmatpush1.msra.mxu0 0.0
    %114 = vmatprep.mubr.f32.mxu0 0.0
    %115 = vmatmul.mubr.f32.gmra.mrb[0].mxu0 %v41
    %v116 = vpop.f32.mrb[0].mxu0
    %v117 = vadd.f32 0.0, %v116
    %v118 = vpop.f32.mrb[0].mxu0
    %v119 = vadd.f32 0.0, %v118
    %120 = vdwg.mxu0
    %v122 = vsel %vm43, %v37, 0
    %v125 = vsel %vm43, %v38, 0
    %127 = vmatprep.subr.mxu0 %v30
    %128 = vmatpush1.msra.mxu0 %v29
    %129 = vmatprep.subr.mxu0 %v32
    %130 = vmatpush1.msra.mxu0 %v31
    %131 = vmatprep.subr.mxu0 %v34
    %132 = vmatpush1.msra.mxu0 %v33
    %133 = vmatprep.subr.mxu0 %v36
    %134 = vmatpush1.msra.mxu0 %v35
    %135 = vmatprep.subr.mxu0 %v125
    %136 = vmatpush1.msra.mxu0 %v122
    %137 = vmatprep.subr.mxu0 0.0
    %138 = vmatpush1.msra.mxu0 0.0
    %139 = vmatprep.subr.mxu0 0.0
    %140 = vmatpush1.msra.mxu0 0.0
    %141 = vmatprep.subr.mxu0 0.0
    %142 = vmatpush1.msra.mxu0 0.0
    %143 = vmatprep.subr.mxu0 0.0
    %144 = vmatpush1.msra.mxu0 0.0
    %145 = vmatprep.subr.mxu0 0.0
    %146 = vmatpush1.msra.mxu0 0.0
    %147 = vmatprep.subr.mxu0 0.0
    %148 = vmatpush1.msra.mxu0 0.0
    %149 = vmatprep.subr.mxu0 0.0
    %150 = vmatpush1.msra.mxu0 0.0
    %151 = vmatprep.subr.mxu0 0.0
    %152 = vmatpush1.msra.mxu0 0.0
    %153 = vmatprep.subr.mxu0 0.0
    %154 = vmatpush1.msra.mxu0 0.0
    %155 = vmatprep.subr.mxu0 0.0
    %156 = vmatpush1.msra.mxu0 0.0
    %157 = vmatprep.subr.mxu0 0.0
    %158 = vmatpush1.msra.mxu0 0.0
    %159 = vmatprep.subr.mxu0 0.0
    %160 = vmatpush1.msra.mxu0 0.0
    %161 = vmatprep.subr.mxu0 0.0
    %162 = vmatpush1.msra.mxu0 0.0
    %163 = vmatprep.subr.mxu0 0.0
    %164 = vmatpush1.msra.mxu0 0.0
    %165 = vmatprep.subr.mxu0 0.0
    %166 = vmatpush1.msra.mxu0 0.0
    %167 = vmatprep.subr.mxu0 0.0
    %168 = vmatpush1.msra.mxu0 0.0
    %169 = vmatprep.subr.mxu0 0.0
    %170 = vmatpush1.msra.mxu0 0.0
    %171 = vmatprep.subr.mxu0 0.0
    %172 = vmatpush1.msra.mxu0 0.0
    %173 = vmatprep.subr.mxu0 0.0
    %174 = vmatpush1.msra.mxu0 0.0
    %175 = vmatprep.subr.mxu0 0.0
    %176 = vmatpush1.msra.mxu0 0.0
    %177 = vmatprep.subr.mxu0 0.0
    %178 = vmatpush1.msra.mxu0 0.0
    %179 = vmatprep.subr.mxu0 0.0
    %180 = vmatpush1.msra.mxu0 0.0
    %181 = vmatprep.subr.mxu0 0.0
    %182 = vmatpush1.msra.mxu0 0.0
    %183 = vmatprep.subr.mxu0 0.0
    %184 = vmatpush1.msra.mxu0 0.0
    %185 = vmatprep.subr.mxu0 0.0
    %186 = vmatpush1.msra.mxu0 0.0
    %187 = vmatprep.subr.mxu0 0.0
    %188 = vmatpush1.msra.mxu0 0.0
    %189 = vmatprep.subr.mxu0 0.0
    %190 = vmatpush1.msra.mxu0 0.0
    %191 = vmatprep.mubr.f32.mxu0 0.0
    %192 = vmatmul.mubr.f32.gmra.mrb[0].mxu0 %v41
    %v193 = vpop.f32.mrb[0].mxu0
    %v194 = vadd.f32 0.0, %v193
    %v195 = vpop.f32.mrb[0].mxu0
    %v196 = vadd.f32 0.0, %v195
    %197 = vdwg.mxu0
    %v198 = vadd.f32 %v117, %v119
    %199 = vadd.xlane.f32.xlu0 %v198
    %v200 = vpop.xlane.xlu0 %199
    %v201 = vadd.f32 %v194, %v196
    %202 = vadd.xlane.f32.xlu0 %v201
    %v203 = vpop.xlane.xlu0 %202
    %v204 = vadd.f32 %v200, %v203
    %v205 = vmul.f32 %v204, 0.002232143
    %v206 = vsub.f32 %v117, %v205
    %v207 = vsub.f32 %v119, %v205
    %v208 = vsub.f32 %v194, %v205
    %v209 = vsub.f32 %v196, %v205
    %v210 = vmul.f32 %v206, %v206
    %v211 = vmul.f32 %v207, %v207
    %v212 = vmul.f32 %v208, %v208
    %v213 = vmul.f32 %v209, %v209
    %v214 = vadd.f32 %v210, %v211
    %215 = vadd.xlane.f32.xlu0 %v214
    %v216 = vpop.xlane.xlu0 %215
    %v217 = vadd.f32 %v212, %v213
    %218 = vadd.xlane.f32.xlu0 %v217
    %v219 = vpop.xlane.xlu0 %218
    %v220 = vadd.f32 %v216, %v219
    %v221 = vmul.f32 %v205, %v205
    %v222 = vmul.f32 %v221, 64.0
    %v223 = vsub.f32 %v220, %v222
    %v224 = vmul.f32 %v223, 0.002232143
    %v225 = vld [vmem:[%s2] sm:$0xff]
    %v226 = vadd.f32 %v224, 1e-05
    %v227 = vrsqrt.pop %v226
    %v228 = vmul.f32 %v225, %v227
    %v229 = vld [vmem:[%s3] sm:$0xff]
    %v230 = vmul.f32 %v205, %v228
    %v231 = vsub.f32 %v229, %v230
    %233 = vset.pattern.permute.xlu0 0
    %234 = vperm.xlu0 %233, %v228
    %v235 = vpop.permute.xlu0 %234
    %v237 = vmul.f32 %v117, %v235
    %v238 = vmul.f32 %v119, %v235
    %v239 = vmul.f32 %v194, %v235
    %v240 = vmul.f32 %v196, %v235
    %242 = vset.pattern.permute.xlu0 0
    %243 = vperm.xlu0 %242, %v231
    %v244 = vpop.permute.xlu0 %243
    %v246 = vadd.f32 %v237, %v244
    %v247 = vadd.f32 %v238, %v244
    %v248 = vadd.f32 %v239, %v244
    %v249 = vadd.f32 %v240, %v244
    %v250 = vmax.f32 %v246, 0.0
    %v251 = vmax.f32 %v247, 0.0
    %v252 = vmax.f32 %v248, 0.0
    %v253 = vmax.f32 %v249, 0.0
    %254 = vst [vmem:[#allocation2] sm:$0xff] %v250
    %255 = vst [vmem:[#allocation2 + $0x8] sm:$0xff] %v251
    %256 = vst [vmem:[#allocation2 + $0x10] sm:$0xff] %v252
    %257 = vst [vmem:[#allocation2 + $0x18] sm:$0xff] %v253
    // Predicated region
    $region18: #{tpu_custom_call.1} parent=1 // pred_check
      _
    $region19: #{tpu_custom_call.1} parent=1 // pred_check_branch
      %259 = sbr.rel (0) target = $region21
    $region20: #{tpu_custom_call.1} parent=1 // pred_region
      %s261 = ssub.s32 512, 512
      %262 = vsyncadd [#allocation3], %s261
      %s263 = sshll.u32 [#allocation2], 4
      %s264 = int_to_ptr.vmem [resolvable:$true] %s263
      %269 = dma.vmem_to_hbm [thread:$0]  %s264, 512, %s4, [#allocation3], 256, 256, 16
    $region21: #{tpu_custom_call.1} parent=1 // pred_fallthru
      _
    // Predicated region
    $region22: #{tpu_custom_call.1} parent=1 // pred_check
      _
    $region23: #{tpu_custom_call.1} parent=1 // pred_check_branch
      %271 = sbr.rel (0) target = $region25
    $region24: #{tpu_custom_call.1} parent=1 // pred_region
      %272 = dma.done [#allocation3], 512
    $region25: #{tpu_custom_call.1} parent=1 // pred_fallthru
      _
    %273 = vsyncpa [#allocation3], 1

</llo_original>
